<compile_context>
chip_gen: v7x
topology: tpu7x:2x2x1
jax: 0.10.0
libtpu: 0.0.40
codegen_flags: <defaults>
</compile_context>

<pallas_src>
import jax
import jax.numpy as jnp
from jax.experimental import pallas as pl
from jax.experimental.pallas import tpu as pltpu


# ----------------------------------------------------------------------------
# Parameter setup (mirrors PositionalEncoding.__init__, deterministic, no files)
# ----------------------------------------------------------------------------
def make_positional_encoding(d_model: int, word_pad_len: int) -> jnp.ndarray:
    pos = jnp.arange(word_pad_len, dtype=jnp.float32)[:, None]          # (L, 1)
    i = jnp.arange(d_model, dtype=jnp.float32)[None, :]                 # (1, D)
    # pos / 10000 ** ((i // 2) * 2 / d_model)
    div = jnp.power(10000.0, (jnp.floor(i / 2.0) * 2.0) / float(d_model))
    pe = pos / div                                                       # (L, D)
    even_mask = (jnp.arange(d_model) % 2 == 0)[None, :]
    pe = jnp.where(even_mask, jnp.sin(pe), jnp.cos(pe))
    return pe.astype(jnp.float32)                                        # (L, D)


# ----------------------------------------------------------------------------
# Pallas kernels (operate on the lane-dense flattened (B, L*D) layout)
# ----------------------------------------------------------------------------
def _pe_add_kernel(x_ref, pe_ref, o_ref):
    # x_ref: (TB, TN), pe_ref: (1, TN) -> broadcast add over the batch rows.
    o_ref[...] = x_ref[...] + pe_ref[...]


def _pe_add_dropout_kernel(x_ref, pe_ref, m_ref, o_ref):
    # m_ref holds the pre-scaled keep mask: values are 0 or 1/(1-p).
    o_ref[...] = (x_ref[...] + pe_ref[...]) * m_ref[...]


# ----------------------------------------------------------------------------
# Tiling heuristic.
#  - tiny inputs: a single block (no per-step pipeline overhead)
#  - otherwise: batch tiles that are multiples of 8 (sublane granularity) and,
#    if rows are too wide, lane tiles that are multiples of 128; each tile kept
#    around `target_bytes` so double-buffered streams fit every generation's
#    scoped VMEM (v5e 16 MiB default).  On v7x one could raise target_bytes to
#    4-8 MiB; 2 MiB is the conservative cross-generation choice.
# ----------------------------------------------------------------------------
def _pick_tiles(batch: int, n: int, itemsize: int, *,
                target_bytes: int = 2 << 20,
                small_bytes: int = 1 << 20):
    total = batch * n * itemsize
    if total <= small_bytes:
        return batch, n                      # one block, one grid point

    row_bytes = n * itemsize

    # Candidate batch tiles: multiple-of-8 divisors of batch (plus batch itself,
    # which is always a legal second-to-last block dim).
    tb_cands = [d for d in range(8, batch + 1, 8) if batch % d == 0]
    if not tb_cands:
        tb_cands = [batch]

    # 1) Split along batch only, if a full row already fits the target.
    if row_bytes <= target_bytes:
        fitting = [tb for tb in tb_cands if tb * row_bytes <= target_bytes]
        if fitting:
            # Prefer a proper split (>=2 grid steps) so both v7x TCs get work.
            proper = [tb for tb in fitting if tb < batch]
            return (max(proper) if proper else max(fitting)), n

    # 2) Rows too wide (or batch awkward): split the lane axis in 128-multiples.
    tb = tb_cands[0]
    tn_fitting = [tn for tn in range(128, n + 1, 128)
                  if n % tn == 0 and tb * tn * itemsize <= target_bytes]
    if tn_fitting:
        return tb, max(tn_fitting)

    # 3) Fallback: smallest legal batch tile, full rows (vmem_limit is sized
    #    from whatever we return, so this stays safe).
    return tb, n


# ----------------------------------------------------------------------------
# Wrapper
# ----------------------------------------------------------------------------
def positional_encoding_forward(
    embeddings: jnp.ndarray,       # (B, L, D) float32
    pe: jnp.ndarray,               # (L, D)    float32
    dropout_p: float = 0.0,
    training: bool = False,
    rng_key=None,
) -> jnp.ndarray:
    B, L, D = embeddings.shape
    assert pe.shape == (L, D)
    N = L * D
    itemsize = embeddings.dtype.itemsize

    # Lane-dense layout plumbing: collapse (L, D) into the last axis so the
    # kernel stores full-width lane-dense rows instead of D-wide masked stores.
    x2 = embeddings.reshape(B, N)
    pe2 = pe.astype(embeddings.dtype).reshape(1, N)

    use_dropout = training and dropout_p > 0.0

    tb, tn = _pick_tiles(B, N, itemsize)
    gb, gn = B // tb, N // tn
    # Lane-tile axis outermost, batch-tile axis innermost: the pe block index
    # (0, ni) is constant across consecutive (inner) steps, so Pallas does not
    # re-stream it every grid step.
    grid = (gn, gb)

    x_spec = pl.BlockSpec((tb, tn), lambda ni, bi: (bi, ni))
    pe_spec = pl.BlockSpec((1, tn), lambda ni, bi: (0, ni))
    o_spec = pl.BlockSpec((tb, tn), lambda ni, bi: (bi, ni))

    # Explicit VMEM budget: double-buffered x/out(/mask) tiles + pe + slack.
    tile_bytes = tb * tn * itemsize
    n_streams = 3 if use_dropout else 2
    vmem_bytes = 2 * n_streams * tile_bytes + 2 * tn * itemsize + (2 << 20)
    vmem_bytes = int(min(max(vmem_bytes, 8 << 20), 64 << 20))

    cparams = pltpu.CompilerParams(
        dimension_semantics=("parallel", "parallel"),
        vmem_limit_bytes=vmem_bytes,
    )
    out_shape = jax.ShapeDtypeStruct((B, N), embeddings.dtype)

    if not use_dropout:
        # Eval mode (or p == 0): dropout is the identity -> broadcast add only.
        out2 = pl.pallas_call(
            _pe_add_kernel,
            out_shape=out_shape,
            grid_spec=pltpu.PrefetchScalarGridSpec(
                num_scalar_prefetch=0,
                grid=grid,
                in_specs=[x_spec, pe_spec],
                out_specs=o_spec,
            ),
            compiler_params=cparams,
        )(x2, pe2)
        return out2.reshape(B, L, D)

    # Training mode: inverted dropout.  Mask is generated once in the wrapper
    # (tiling-invariant, reproducible) and pre-scaled by 1/(1-p).
    if rng_key is None:
        rng_key = jax.random.PRNGKey(0)
    p = float(dropout_p)
    scale = 1.0 / (1.0 - p)
    keep = jax.random.bernoulli(rng_key, 1.0 - p, (B, N))
    mask = jnp.where(keep, jnp.float32(scale), jnp.float32(0.0)).astype(
        embeddings.dtype)

    out2 = pl.pallas_call(
        _pe_add_dropout_kernel,
        out_shape=out_shape,
        grid_spec=pltpu.PrefetchScalarGridSpec(
            num_scalar_prefetch=0,
            grid=grid,
            in_specs=[x_spec, pe_spec, x_spec],
            out_specs=o_spec,
        ),
        compiler_params=cparams,
    )(x2, pe2, mask)
    return out2.reshape(B, L, D)


# ----------------------------------------------------------------------------
# Main
# ----------------------------------------------------------------------------
if __name__ == "__main__":
    d_model = 32        # emb size
    word_pad_len = 8    # padded sentence length
    batch = 2
    dropout_p = 0.1

    key = jax.random.PRNGKey(0)
    embeddings = jax.random.normal(key, (batch, word_pad_len, d_model),
                                   dtype=jnp.float32)

    pe = make_positional_encoding(d_model, word_pad_len)

    # Eval-mode forward (dropout == identity), matching module inference semantics.
    out = positional_encoding_forward(embeddings, pe, dropout_p=dropout_p,
                                      training=False)
    out = jax.block_until_ready(out)

    # Correctness check against plain-JAX reference (eval mode).
    ref = embeddings + pe[None, :, :]
    assert jnp.allclose(out, ref, atol=1e-6, rtol=1e-6), "mismatch vs reference"

    # Exercise the training (dropout) path: every output element must be either
    # 0 (dropped) or (x + pe) / (1 - p) (kept).
    out_tr = positional_encoding_forward(embeddings, pe, dropout_p=dropout_p,
                                         training=True,
                                         rng_key=jax.random.PRNGKey(123))
    out_tr = jax.block_until_ready(out_tr)
    assert out_tr.shape == embeddings.shape
    scaled_ref = ref / (1.0 - dropout_p)
    ok = jnp.all((out_tr == 0.0) | jnp.isclose(out_tr, scaled_ref,
                                               atol=1e-5, rtol=1e-5))
    assert bool(ok), "dropout path mismatch vs reference"

    print("KERNEL_OK")
</pallas_src>

<mosaic_0001>
module attributes {stable_mosaic.version = 11 : i64} {
  func.func @_pe_add_kernel(%arg0: i32, %arg1: i32, %arg2: memref<2x256xf32, #tpu.memory_space<vmem>>, %arg3: memref<1x256xf32, #tpu.memory_space<vmem>>, %arg4: memref<2x256xf32, #tpu.memory_space<vmem>>) attributes {dimension_semantics = [#tpu.dimension_semantics<parallel>, #tpu.dimension_semantics<parallel>], iteration_bounds = array<i64: 1, 1>, scalar_prefetch = 0 : i64, scratch_operands = 0 : i64, tpu.core_type = #tpu.core_type<tc>, window_params = [{transform_indices = @transform_0, window_bounds = array<i64: 2, 256>}, {transform_indices = @transform_1, window_bounds = array<i64: 1, 256>}, {transform_indices = @transform_2, window_bounds = array<i64: 2, 256>}]} {
    %c0 = arith.constant 0 : index
    %c0_0 = arith.constant 0 : index
    %0 = vector.load %arg2[%c0, %c0_0] : memref<2x256xf32, #tpu.memory_space<vmem>>, vector<2x256xf32>
    %c0_1 = arith.constant 0 : index
    %c0_2 = arith.constant 0 : index
    %1 = vector.load %arg3[%c0_1, %c0_2] : memref<1x256xf32, #tpu.memory_space<vmem>>, vector<1x256xf32>
    %2 = vector.broadcast %1 : vector<1x256xf32> to vector<2x256xf32>
    %3 = arith.addf %0, %2 : vector<2x256xf32>
    %c0_3 = arith.constant 0 : index
    %c0_4 = arith.constant 0 : index
    %4 = vector.load %arg4[%c0_3, %c0_4] : memref<2x256xf32, #tpu.memory_space<vmem>>, vector<2x256xf32>
    tpu.vector_store %arg4[%c0_3, %c0_4], %3 {strides = array<i32>} : memref<2x256xf32, #tpu.memory_space<vmem>>, vector<2x256xf32>,
    return
  }
  func.func @transform_0(%arg0: i32, %arg1: i32) -> (i32, i32) {
    %c0_i32 = arith.constant 0 : i32
    return %arg1, %arg0 : i32, i32
  }
  func.func @transform_1(%arg0: i32, %arg1: i32) -> (i32, i32) {
    %c0_i32 = arith.constant 0 : i32
    %c0_i32_0 = arith.constant 0 : i32
    return %c0_i32, %arg0 : i32, i32
  }
  func.func @transform_2(%arg0: i32, %arg1: i32) -> (i32, i32) {
    %c0_i32 = arith.constant 0 : i32
    return %arg1, %arg0 : i32, i32
  }
}

</mosaic_0001>

<llo_original>
// kernel: tpu_custom_call.1
$region0: #{tpu_custom_call.1}
  #allocation0 [shape = 'u32[]', space=smem, size = 0x4, offset = 0x4, fixed_abs, tag = 'smem constant byte address 0x4 - core index']
  #allocation1 [shape = 'u32[144,128]{1,0:T(1,128)}', space=vmem, size = 0x12000, scoped, tag = 'internal scratch']
  %s0 = inlined_call_operand.hbm [shape: f32[2,256], index: 0, kind: input, shape index: {}]
  %s1 = inlined_call_operand.vmem [shape: f32[1,256], index: 1, kind: input, shape index: {}]
  %s2 = inlined_call_operand.hbm [shape: f32[2,256], index: 2, kind: output, shape index: {}]
  %s3 = sld [smem:[#allocation0]]
  $region22: #{tpu_custom_call.1} parent=0
    _
  %s5 = ssub.s32 1, %s3
  %s6 = scalar_select 0, %s5, %s3
  $region1: #{tpu_custom_call.1} parent=0
    #allocation2 [shape = 'u8[2048]{0}', space=vmem, size = 0x800, scoped, tag = 'input window, operand 0, single buffered']
    #allocation3 [shape = 's32[1]{0}', space=sflag, size = 0x4, scoped, tag = 'scoped memory for tpu_custom_call.1']
    #allocation4 [shape = 's32[1]{0}', space=sflag, size = 0x4, scoped, tag = 'scoped memory for tpu_custom_call.1']
    #allocation5 [shape = 'u8[2048]{0}', space=vmem, size = 0x800, scoped, tag = 'output window, operand 0, single buffered']
    %7 = vsyncpa [#allocation3], 0
    %8 = vsyncpa [#allocation4], 0
    // Predicated region
    $region2: #{tpu_custom_call.1} parent=1 // pred_check
      _
    $region3: #{tpu_custom_call.1} parent=1 // pred_check_branch
      %10 = sbr.rel (0) target = $region5
    $region4: #{tpu_custom_call.1} parent=1 // pred_region
      %s12 = ssub.s32 64, 64
      %13 = vsyncadd [#allocation3], %s12
      %s15 = sshll.u32 [#allocation2], 4
      %s16 = int_to_ptr.vmem [resolvable:$true] %s15
      %18 = dma.hbm_to_vmem [thread:$0]  %s0, 64, %s16, [#allocation3]
    $region5: #{tpu_custom_call.1} parent=1 // pred_fallthru
      _
    // Predicated region
    $region6: #{tpu_custom_call.1} parent=1 // pred_check
      _
    $region7: #{tpu_custom_call.1} parent=1 // pred_check_branch
      %20 = sbr.rel (0) target = $region9
    $region8: #{tpu_custom_call.1} parent=1 // pred_region
      _
    $region9: #{tpu_custom_call.1} parent=1 // pred_fallthru
      _
    // Predicated region
    $region10: #{tpu_custom_call.1} parent=1 // pred_check
      _
    $region11: #{tpu_custom_call.1} parent=1 // pred_check_branch
      %22 = sbr.rel (0) target = $region13
    $region12: #{tpu_custom_call.1} parent=1 // pred_region
      %23 = dma.done [#allocation3], 64
    $region13: #{tpu_custom_call.1} parent=1 // pred_fallthru
      _
    %v24 = vld [vmem:[#allocation2] sm:$0xf]
    %v25 = vld [vmem:[%s1] sm:$0x3]
    %v27 = vlaneseq
    %v28 = vshrl.u32 %v27, 7
    %v29 = vsub.s32 0, %v28
    %v30 = vrot.slane %v25, %v29
    %v31 = vlaneseq
    %v32 = vshrl.u32 %v31, 7
    %v33 = vsub.s32 1, %v32
    %v34 = vrot.slane %v25, %v33
    %v35 = vcombine.low %v30, %v34
    %v37 = vunpack.c.l.s4 1983009808
    %v38 = vunpack.c.0.s8 %v37
    %v39 = vlaneseq
    %v40 = vshrl.u32 %v39, 7
    %v41 = vsub.s32 %v38, %v40
    %v42 = vrot.slane %v35, %v41
    %v44 = vadd.f32 %v24, %v42
    %45 = vst [vmem:[#allocation5] sm:$0xf] %v44
    // Predicated region
    $region14: #{tpu_custom_call.1} parent=1 // pred_check
      _
    $region15: #{tpu_custom_call.1} parent=1 // pred_check_branch
      %47 = sbr.rel (0) target = $region17
    $region16: #{tpu_custom_call.1} parent=1 // pred_region
      %s49 = ssub.s32 64, 64
      %50 = vsyncadd [#allocation4], %s49
      %s52 = sshll.u32 [#allocation5], 4
      %s53 = int_to_ptr.vmem [resolvable:$true] %s52
      %55 = dma.vmem_to_hbm [thread:$0]  %s53, 64, %s2, [#allocation4]
    $region17: #{tpu_custom_call.1} parent=1 // pred_fallthru
      _
    // Predicated region
    $region18: #{tpu_custom_call.1} parent=1 // pred_check
      _
    $region19: #{tpu_custom_call.1} parent=1 // pred_check_branch
      %57 = sbr.rel (0) target = $region21
    $region20: #{tpu_custom_call.1} parent=1 // pred_region
      %58 = dma.done [#allocation4], 64
    $region21: #{tpu_custom_call.1} parent=1 // pred_fallthru
      _
    %59 = vsyncpa [#allocation3], 1
    %60 = vsyncpa [#allocation4], 1

</llo_original>
